<compile_context>
chip_gen: v6e
topology: v6e:2x2x1
jax: 0.10.0
libtpu: 0.0.40
codegen_flags: <defaults>
</compile_context>

<pallas_src>
import math

import jax
import jax.numpy as jnp
from jax.experimental import pallas as pl
from jax.experimental.pallas import tpu as pltpu


def _round_up(x: int, m: int) -> int:
    return ((x + m - 1) // m) * m


def _tpu_generation() -> str:
    try:
        kind = jax.devices()[0].device_kind.lower()
    except Exception:
        return "unknown"
    if "v7" in kind or "7x" in kind:
        return "v7x"
    if "v6" in kind:
        return "v6e"
    if "v5" in kind:
        return "v5e"
    return "unknown"


# Per-generation defaults: batch tile (arithmetic-intensity lever), F tile,
# and an explicit scoped-VMEM limit.
_GEN_CFG = {
    "v5e": dict(tm=256, tf=512, vmem_limit=96 << 20),   # crossover ~240 fl/B
    "v6e": dict(tm=768, tf=512, vmem_limit=96 << 20),   # crossover ~650 fl/B
    "v7x": dict(tm=512, tf=512, vmem_limit=48 << 20),   # 64 MiB VMEM, 2 TCs
    "unknown": dict(tm=256, tf=512, vmem_limit=64 << 20),
}


def _pick_tile(total: int, desired: int, align: int) -> int:
    """Largest multiple of `align` that divides `total` and is <= desired."""
    best = align
    t = align
    while t <= total:
        if total % t == 0 and t <= desired:
            best = t
        t += align
    return best


def _stream_vmem_bytes(tm, tf, Dp, itemsize, with_acc):
    # double-buffered x / W_enc^T tile / b_e tile / W_dec^T tile / b_d /
    # f tile / recon tile (+ f32 accumulator scratch when used).
    buffered = (tm * Dp) + (Dp * tf) + tf + (tf * Dp) + Dp + (tm * tf) + (tm * Dp)
    return 2 * itemsize * buffered + (4 * tm * Dp if with_acc else 0)


def _resident_vmem_bytes(tm, Dp, Fp, itemsize):
    buffered = (tm * Dp) + (Dp * Fp) + Fp + (Fp * Dp) + Dp + (tm * Fp) + (tm * Dp)
    return 2 * itemsize * buffered


# ----------------------------- kernels -------------------------------------


def _sae_resident_kernel(x_ref, w_enc_t_ref, b_e_ref, w_dec_t_ref, b_d_ref,
                         f_ref, recon_ref):
    # Weights are resident in VMEM; 1-D grid over batch tiles.
    pre = jnp.dot(x_ref[...], w_enc_t_ref[...],
                  preferred_element_type=jnp.float32)
    f = jnp.maximum(pre + b_e_ref[...].astype(jnp.float32), 0.0)
    f_ref[...] = f.astype(f_ref.dtype)
    recon = jnp.dot(f.astype(w_dec_t_ref.dtype), w_dec_t_ref[...],
                    preferred_element_type=jnp.float32)
    recon_ref[...] = (recon + b_d_ref[...].astype(jnp.float32)
                      ).astype(recon_ref.dtype)


def _sae_stream_kernel_f32out(x_ref, w_enc_t_ref, b_e_ref, w_dec_t_ref,
                              b_d_ref, f_ref, recon_ref):
    # Grid (batch_tile, f_tile); F is the reduction axis; recon (f32) is the
    # resident accumulator itself (no extra scratch).
    fi = pl.program_id(1)

    @pl.when(fi == 0)
    def _():
        recon_ref[...] = jnp.broadcast_to(
            b_d_ref[...].astype(jnp.float32), recon_ref.shape)

    pre = jnp.dot(x_ref[...], w_enc_t_ref[...],
                  preferred_element_type=jnp.float32)
    f = jnp.maximum(pre + b_e_ref[...].astype(jnp.float32), 0.0)
    f_ref[...] = f.astype(f_ref.dtype)
    recon_ref[...] += jnp.dot(f.astype(w_dec_t_ref.dtype), w_dec_t_ref[...],
                              preferred_element_type=jnp.float32)


def _sae_stream_kernel_acc(x_ref, w_enc_t_ref, b_e_ref, w_dec_t_ref, b_d_ref,
                           f_ref, recon_ref, acc_ref):
    # Same as above but for non-f32 outputs: f32 scratch accumulator,
    # downcast in the last-F-step epilogue.
    fi = pl.program_id(1)

    @pl.when(fi == 0)
    def _():
        acc_ref[...] = jnp.zeros_like(acc_ref)

    pre = jnp.dot(x_ref[...], w_enc_t_ref[...],
                  preferred_element_type=jnp.float32)
    f = jnp.maximum(pre + b_e_ref[...].astype(jnp.float32), 0.0)
    f_ref[...] = f.astype(f_ref.dtype)
    acc_ref[...] += jnp.dot(f.astype(w_dec_t_ref.dtype), w_dec_t_ref[...],
                            preferred_element_type=jnp.float32)

    @pl.when(fi == pl.num_programs(1) - 1)
    def _():
        recon_ref[...] = (acc_ref[...] + b_d_ref[...].astype(jnp.float32)
                          ).astype(recon_ref.dtype)


# ----------------------------- wrappers ------------------------------------


def prepare_params(w_enc, bias_e, w_dec, bias_d, *, compute_dtype=None,
                   align_d=None):
    """One-time prep: cast / transpose / zero-pad weights into kernel layout.

    Call once per parameter update (e.g. after optimizer step / renorm),
    NOT per forward call.
    """
    F, D = w_enc.shape
    assert w_dec.shape == (D, F)
    gen = _tpu_generation()
    if align_d is None:
        # v6e/v7x MXUs are 2x256x256 — prefer 256-aligned contraction dims
        # when D is big enough that the extra padding is negligible.
        align_d = 256 if (gen in ("v6e", "v7x") and D > 128) else 128
    cdt = jnp.dtype(compute_dtype) if compute_dtype is not None else w_enc.dtype
    Dp = _round_up(D, align_d)
    Fp = _round_up(F, 128)

    # Zero padding is exact for this graph: padded `pre` columns are
    # relu(0 + 0) = 0 and contribute nothing to recon.
    w_enc_t = jnp.zeros((Dp, Fp), cdt).at[:D, :F].set(w_enc.astype(cdt).T)
    w_dec_t = jnp.zeros((Fp, Dp), cdt).at[:F, :D].set(w_dec.astype(cdt).T)
    b_e = jnp.zeros((1, Fp), cdt).at[0, :F].set(bias_e.astype(cdt))
    b_d = jnp.zeros((1, Dp), cdt).at[0, :D].set(bias_d.astype(cdt))
    return dict(w_enc_t=w_enc_t, w_dec_t=w_dec_t, b_e=b_e, b_d=b_d,
                D=D, F=F, Dp=Dp, Fp=Fp, dtype=cdt)


def orthogonal_sae_forward(x, params, *, tm=None, tf=None, use_resident=None):
    """Returns (x, f, recon) with the same semantics as OrthogonalSAE.forward."""
    B, D = x.shape
    Dp, Fp, F = params["Dp"], params["Fp"], params["F"]
    assert D == params["D"]
    cdt = params["dtype"]
    itemsize = jnp.dtype(cdt).itemsize

    gen = _tpu_generation()
    cfg = _GEN_CFG.get(gen, _GEN_CFG["unknown"])
    vmem_limit = cfg["vmem_limit"]
    budget = int(0.85 * vmem_limit)

    Bp = _round_up(B, 8)
    desired_tm = tm if tm is not None else cfg["tm"]
    desired_tf = tf if tf is not None else cfg["tf"]
    if gen == "v7x" and Bp >= 16:
        # 2 TensorCores per chip: make sure the "parallel" batch axis has at
        # least 2 tiles so both cores get work.
        desired_tm = min(desired_tm, max(8, Bp // 2))

    # Fast path: only copy/pad x when actually needed.
    x_c = x.astype(cdt) if x.dtype != cdt else x
    if (B, D) == (Bp, Dp):
        x_p = x_c
    else:
        x_p = jnp.zeros((Bp, Dp), cdt).at[:B, :D].set(x_c)

    # Weights-resident path feasibility (weights DMA'd from HBM exactly once).
    tm_res = _pick_tile(Bp, desired_tm, 8)
    while (_resident_vmem_bytes(tm_res, Dp, Fp, itemsize) > budget
           and tm_res > 8):
        tm_res = _pick_tile(Bp, tm_res // 2, 8)
    resident_fits = _resident_vmem_bytes(tm_res, Dp, Fp, itemsize) <= budget
    if use_resident is None:
        use_resident = resident_fits

    if use_resident and resident_fits:
        grid = (Bp // tm_res,)
        f_p, recon_p = pl.pallas_call(
            _sae_resident_kernel,
            out_shape=(jax.ShapeDtypeStruct((Bp, Fp), cdt),
                       jax.ShapeDtypeStruct((Bp, Dp), cdt)),
            grid=grid,
            in_specs=[
                pl.BlockSpec((tm_res, Dp), lambda b: (b, 0)),   # x tile
                pl.BlockSpec((Dp, Fp), lambda b: (0, 0)),       # W_enc^T (resident)
                pl.BlockSpec((1, Fp), lambda b: (0, 0)),        # bias_e
                pl.BlockSpec((Fp, Dp), lambda b: (0, 0)),       # W_dec^T (resident)
                pl.BlockSpec((1, Dp), lambda b: (0, 0)),        # bias_d
            ],
            out_specs=(pl.BlockSpec((tm_res, Fp), lambda b: (b, 0)),
                       pl.BlockSpec((tm_res, Dp), lambda b: (b, 0))),
            compiler_params=pltpu.CompilerParams(
                dimension_semantics=("parallel",),
                vmem_limit_bytes=vmem_limit),
        )(x_p, params["w_enc_t"], params["b_e"],
          params["w_dec_t"], params["b_d"])
    else:
        # Streaming path: weights streamed over the F (reduction) axis.
        tm_ = _pick_tile(Bp, desired_tm, 8)
        tf_ = _pick_tile(Fp, desired_tf, 128)
        with_acc = (jnp.dtype(cdt) != jnp.dtype(jnp.float32))
        while _stream_vmem_bytes(tm_, tf_, Dp, itemsize, with_acc) > budget:
            if tm_ > 256:
                tm_ = _pick_tile(Bp, tm_ // 2, 8)
            elif tf_ > 256:
                tf_ = _pick_tile(Fp, tf_ // 2, 128)
            elif tm_ > 8:
                tm_ = _pick_tile(Bp, tm_ // 2, 8)
            elif tf_ > 128:
                tf_ = _pick_tile(Fp, tf_ // 2, 128)
            else:
                break

        grid = (Bp // tm_, Fp // tf_)
        in_specs = [
            pl.BlockSpec((tm_, Dp), lambda b, f: (b, 0)),   # x: resident over F
            pl.BlockSpec((Dp, tf_), lambda b, f: (0, f)),   # W_enc^T tile (streamed)
            pl.BlockSpec((1, tf_), lambda b, f: (0, f)),    # bias_e tile
            pl.BlockSpec((tf_, Dp), lambda b, f: (f, 0)),   # W_dec^T tile (streamed)
            pl.BlockSpec((1, Dp), lambda b, f: (0, 0)),     # bias_d (resident)
        ]
        out_specs = (pl.BlockSpec((tm_, tf_), lambda b, f: (b, f)),  # f tile
                     pl.BlockSpec((tm_, Dp), lambda b, f: (b, 0)))   # recon acc
        out_shape = (jax.ShapeDtypeStruct((Bp, Fp), cdt),
                     jax.ShapeDtypeStruct((Bp, Dp), cdt))
        cparams = pltpu.CompilerParams(
            dimension_semantics=("parallel", "arbitrary"),
            vmem_limit_bytes=vmem_limit)
        args = (x_p, params["w_enc_t"], params["b_e"],
                params["w_dec_t"], params["b_d"])
        if with_acc:
            f_p, recon_p = pl.pallas_call(
                _sae_stream_kernel_acc,
                out_shape=out_shape, grid=grid,
                in_specs=in_specs, out_specs=out_specs,
                scratch_shapes=[pltpu.VMEM((tm_, Dp), jnp.float32)],
                compiler_params=cparams,
            )(*args)
        else:
            f_p, recon_p = pl.pallas_call(
                _sae_stream_kernel_f32out,
                out_shape=out_shape, grid=grid,
                in_specs=in_specs, out_specs=out_specs,
                compiler_params=cparams,
            )(*args)

    f_out = f_p[:B, :F] if (Bp, Fp) != (B, F) else f_p
    recon_out = recon_p[:B, :D] if (Bp, Dp) != (B, D) else recon_p
    return x, f_out, recon_out


def init_params(key, input_dim, num_features, dtype=jnp.float32):
    """Deterministic init mirroring OrthogonalSAE.__init__."""
    # kaiming_uniform_(W_dec, a=sqrt(5)) on shape (input_dim, num_features):
    # fan_in = num_features -> bound = 1/sqrt(fan_in)
    bound = 1.0 / math.sqrt(num_features)
    w_dec = jax.random.uniform(key, (input_dim, num_features),
                               minval=-bound, maxval=bound, dtype=dtype)
    norm = jnp.sqrt(jnp.sum(w_dec * w_dec, axis=0, keepdims=True))
    w_dec = w_dec / jnp.maximum(norm, 1e-12)      # normalize columns (dim=0)
    w_enc = w_dec.T                               # W_enc = W_dec.T.clone()
    bias_e = jnp.zeros((num_features,), dtype)
    bias_d = jnp.zeros((input_dim,), dtype)
    return w_enc, bias_e, w_dec, bias_d


if __name__ == "__main__":
    key = jax.random.PRNGKey(0)
    k_x, k_w = jax.random.split(key)

    # Small but non-trivially padded shapes: exercises D-padding (96 -> 128),
    # F-padding (640 -> 768), multiple batch tiles and multiple F tiles.
    batch = 16
    input_dim = 96
    num_features = 640

    x = jax.random.normal(k_x, (batch, input_dim), jnp.float32)
    w_enc, bias_e, w_dec, bias_d = init_params(k_w, input_dim, num_features)

    # pure-JAX reference
    pre_ref = x @ w_enc.T + bias_e
    f_ref = jnp.maximum(pre_ref, 0.0)
    recon_ref = f_ref @ w_dec.T + bias_d

    # 1) f32, weights-resident fast path (auto-selected: weights fit VMEM).
    params_f32 = prepare_params(w_enc, bias_e, w_dec, bias_d)
    x_out, f1, recon1 = orthogonal_sae_forward(x, params_f32)
    jax.block_until_ready((x_out, f1, recon1))
    assert x_out is x
    assert jnp.allclose(f1, f_ref, atol=1e-4, rtol=1e-4)
    assert jnp.allclose(recon1, recon_ref, atol=1e-4, rtol=1e-4)

    # 2) f32, streaming F-reduction path (forced; accumulates into recon_ref).
    _, f2, recon2 = orthogonal_sae_forward(x, params_f32, tm=8, tf=256,
                                           use_resident=False)
    jax.block_until_ready((f2, recon2))
    assert jnp.allclose(f2, f_ref, atol=1e-4, rtol=1e-4)
    assert jnp.allclose(recon2, recon_ref, atol=1e-4, rtol=1e-4)

    # 3) bf16 operands (f32 accumulation), streaming path with acc scratch.
    params_bf16 = prepare_params(w_enc, bias_e, w_dec, bias_d,
                                 compute_dtype=jnp.bfloat16)
    _, f3, recon3 = orthogonal_sae_forward(x, params_bf16, tm=8, tf=256,
                                           use_resident=False)
    jax.block_until_ready((f3, recon3))
    recon3_f32 = recon3.astype(jnp.float32)
    assert bool(jnp.all(jnp.isfinite(recon3_f32)))
    assert float(jnp.max(jnp.abs(recon3_f32 - recon_ref))) < 0.5

    # TODO(synk): loss()/compute_competition()/ortho_penalty()/renorm() are
    # training-time utilities outside forward() and are not kernelized here.
    print("KERNEL_OK")
</pallas_src>

<mosaic_0001>
module attributes {stable_mosaic.version = 11 : i64} {
  func.func @_sae_resident_kernel(%arg0: i32, %arg1: memref<16x128xf32, #tpu.memory_space<vmem>>, %arg2: memref<128x640xf32, #tpu.memory_space<vmem>>, %arg3: memref<1x640xf32, #tpu.memory_space<vmem>>, %arg4: memref<640x128xf32, #tpu.memory_space<vmem>>, %arg5: memref<1x128xf32, #tpu.memory_space<vmem>>, %arg6: memref<16x640xf32, #tpu.memory_space<vmem>>, %arg7: memref<16x128xf32, #tpu.memory_space<vmem>>) attributes {dimension_semantics = [#tpu.dimension_semantics<parallel>], iteration_bounds = array<i64: 1>, scalar_prefetch = 0 : i64, scratch_operands = 0 : i64, tpu.core_type = #tpu.core_type<tc>, window_params = [{transform_indices = @transform_0, window_bounds = array<i64: 16, 128>}, {pipeline_mode = #tpu.pipeline_mode<synchronous>, transform_indices = @transform_1, window_bounds = array<i64: 128, 640>}, {pipeline_mode = #tpu.pipeline_mode<synchronous>, transform_indices = @transform_2, window_bounds = array<i64: 1, 640>}, {pipeline_mode = #tpu.pipeline_mode<synchronous>, transform_indices = @transform_3, window_bounds = array<i64: 640, 128>}, {pipeline_mode = #tpu.pipeline_mode<synchronous>, transform_indices = @transform_4, window_bounds = array<i64: 1, 128>}, {transform_indices = @transform_5, window_bounds = array<i64: 16, 640>}, {transform_indices = @transform_6, window_bounds = array<i64: 16, 128>}]} {
    %c0 = arith.constant 0 : index
    %c0_0 = arith.constant 0 : index
    %0 = vector.load %arg1[%c0, %c0_0] : memref<16x128xf32, #tpu.memory_space<vmem>>, vector<16x128xf32>
    %c0_1 = arith.constant 0 : index
    %c0_2 = arith.constant 0 : index
    %1 = vector.load %arg2[%c0_1, %c0_2] : memref<128x640xf32, #tpu.memory_space<vmem>>, vector<128x640xf32>
    %cst = arith.constant dense<0.000000e+00> : vector<16x640xf32>
    %2 = tpu.matmul %0, %1, %cst {dimension_numbers = #tpu.dot_dimension_numbers<[1], [0], [0], [1], [0, 0, 1, 1], [], []>} : vector<16x128xf32>, vector<128x640xf32>, vector<16x640xf32> -> vector<16x640xf32>
    %c0_3 = arith.constant 0 : index
    %c0_4 = arith.constant 0 : index
    %3 = vector.load %arg3[%c0_3, %c0_4] : memref<1x640xf32, #tpu.memory_space<vmem>>, vector<1x640xf32>
    %4 = vector.broadcast %3 : vector<1x640xf32> to vector<16x640xf32>
    %5 = arith.addf %2, %4 : vector<16x640xf32>
    %cst_5 = arith.constant 0.000000e+00 : f32
    %6 = vector.broadcast %cst_5 : f32 to vector<16x640xf32>
    %7 = arith.maximumf %5, %6 : vector<16x640xf32>
    %c0_6 = arith.constant 0 : index
    %c0_7 = arith.constant 0 : index
    %8 = vector.load %arg6[%c0_6, %c0_7] : memref<16x640xf32, #tpu.memory_space<vmem>>, vector<16x640xf32>
    tpu.vector_store %arg6[%c0_6, %c0_7], %7 {strides = array<i32>} : memref<16x640xf32, #tpu.memory_space<vmem>>, vector<16x640xf32>,
    %c0_8 = arith.constant 0 : index
    %c0_9 = arith.constant 0 : index
    %9 = vector.load %arg4[%c0_8, %c0_9] : memref<640x128xf32, #tpu.memory_space<vmem>>, vector<640x128xf32>
    %cst_10 = arith.constant dense<0.000000e+00> : vector<16x128xf32>
    %10 = tpu.matmul %7, %9, %cst_10 {dimension_numbers = #tpu.dot_dimension_numbers<[1], [0], [0], [1], [0, 0, 1, 1], [], []>} : vector<16x640xf32>, vector<640x128xf32>, vector<16x128xf32> -> vector<16x128xf32>
    %c0_11 = arith.constant 0 : index
    %c0_12 = arith.constant 0 : index
    %11 = vector.load %arg5[%c0_11, %c0_12] : memref<1x128xf32, #tpu.memory_space<vmem>>, vector<1x128xf32>
    %12 = vector.broadcast %11 : vector<1x128xf32> to vector<16x128xf32>
    %13 = arith.addf %10, %12 : vector<16x128xf32>
    %c0_13 = arith.constant 0 : index
    %c0_14 = arith.constant 0 : index
    %14 = vector.load %arg7[%c0_13, %c0_14] : memref<16x128xf32, #tpu.memory_space<vmem>>, vector<16x128xf32>
    tpu.vector_store %arg7[%c0_13, %c0_14], %13 {strides = array<i32>} : memref<16x128xf32, #tpu.memory_space<vmem>>, vector<16x128xf32>,
    return
  }
  func.func @transform_0(%arg0: i32) -> (i32, i32) {
    %c0_i32 = arith.constant 0 : i32
    %c0_i32_0 = arith.constant 0 : i32
    return %arg0, %c0_i32 : i32, i32
  }
  func.func @transform_1(%arg0: i32) -> (i32, i32) {
    %c0_i32 = arith.constant 0 : i32
    %c0_i32_0 = arith.constant 0 : i32
    %c0_i32_1 = arith.constant 0 : i32
    return %c0_i32, %c0_i32_0 : i32, i32
  }
  func.func @transform_2(%arg0: i32) -> (i32, i32) {
    %c0_i32 = arith.constant 0 : i32
    %c0_i32_0 = arith.constant 0 : i32
    %c0_i32_1 = arith.constant 0 : i32
    return %c0_i32, %c0_i32_0 : i32, i32
  }
  func.func @transform_3(%arg0: i32) -> (i32, i32) {
    %c0_i32 = arith.constant 0 : i32
    %c0_i32_0 = arith.constant 0 : i32
    %c0_i32_1 = arith.constant 0 : i32
    return %c0_i32, %c0_i32_0 : i32, i32
  }
  func.func @transform_4(%arg0: i32) -> (i32, i32) {
    %c0_i32 = arith.constant 0 : i32
    %c0_i32_0 = arith.constant 0 : i32
    %c0_i32_1 = arith.constant 0 : i32
    return %c0_i32, %c0_i32_0 : i32, i32
  }
  func.func @transform_5(%arg0: i32) -> (i32, i32) {
    %c0_i32 = arith.constant 0 : i32
    %c0_i32_0 = arith.constant 0 : i32
    return %arg0, %c0_i32 : i32, i32
  }
  func.func @transform_6(%arg0: i32) -> (i32, i32) {
    %c0_i32 = arith.constant 0 : i32
    %c0_i32_0 = arith.constant 0 : i32
    return %arg0, %c0_i32 : i32, i32
  }
}

</mosaic_0001>

<llo_original>
// kernel: tpu_custom_call.1
$region0: #{tpu_custom_call.1}
  #allocation0 [shape = 'u32[]', space=smem, size = 0x4, offset = 0x4, fixed_abs, tag = 'smem constant byte address 0x4 - core index']
  #allocation1 [shape = 'u32[144,128]{1,0:T(1,128)}', space=vmem, size = 0x12000, scoped, tag = 'internal scratch']
  %s0 = inlined_call_operand.hbm [shape: f32[16,128], index: 0, kind: input, shape index: {}]
  %s1 = inlined_call_operand.hbm [shape: f32[128,640], index: 1, kind: input, shape index: {}]
  %s2 = inlined_call_operand.hbm [shape: f32[1,640], index: 2, kind: input, shape index: {}]
  %s3 = inlined_call_operand.hbm [shape: f32[640,128], index: 3, kind: input, shape index: {}]
  %s4 = inlined_call_operand.vmem [shape: f32[1,128], index: 4, kind: input, shape index: {}]
  %s5 = inlined_call_operand.hbm [shape: f32[16,640], index: 5, kind: output, shape index: {0}]
  %s6 = inlined_call_operand.hbm [shape: f32[16,128], index: 6, kind: output, shape index: {1}]
  %7 = xla_tuple %s5, %s6
  %s8 = sld [smem:[#allocation0]]
  $region54: #{tpu_custom_call.1} parent=0
    _
  %s10 = ssub.s32 1, %s8
  %s11 = scalar_select 0, %s10, %s8
  $region1: #{tpu_custom_call.1} parent=0
    #allocation2 [shape = 'u8[8192]{0}', space=vmem, size = 0x2000, scoped, tag = 'input window, operand 0, single buffered']
    #allocation3 [shape = 's32[1]{0}', space=sflag, size = 0x4, scoped, tag = 'scoped memory for tpu_custom_call.1']
    #allocation4 [shape = 's32[1]{0}', space=sflag, size = 0x4, scoped, tag = 'scoped memory for tpu_custom_call.1']
    #allocation5 [shape = 'u8[327680]{0}', space=vmem, size = 0x50000, scoped, tag = 'input window, operand 1, single buffered']
    #allocation6 [shape = 's32[1]{0}', space=sflag, size = 0x4, scoped, tag = 'scoped memory for tpu_custom_call.1']
    #allocation7 [shape = 'u8[2560]{0}', space=vmem, size = 0xc00, scoped, tag = 'input window, operand 2, single buffered']
    #allocation8 [shape = 'u8[327680]{0}', space=vmem, size = 0x50000, scoped, tag = 'input window, operand 3, single buffered']
    #allocation9 [shape = 's32[1]{0}', space=sflag, size = 0x4, scoped, tag = 'scoped memory for tpu_custom_call.1']
    #allocation10 [shape = 'u8[40960]{0}', space=vmem, size = 0xa000, scoped, tag = 'output window, operand 0, single buffered']
    #allocation11 [shape = 'u8[8192]{0}', space=vmem, size = 0x2000, scoped, tag = 'output window, operand 1, single buffered']
    #allocation12 [shape = 's32[1]{0}', space=sflag, size = 0x4, scoped, tag = 'scoped memory for tpu_custom_call.1']
    %12 = vsyncpa [#allocation3], 0
    %13 = vsyncpa [#allocation6], 0
    %14 = vsyncpa [#allocation9], 0
    %15 = vsyncpa [#allocation4], 0
    %16 = vsyncpa [#allocation12], 0
    // Predicated region
    $region2: #{tpu_custom_call.1} parent=1 // pred_check
      _
    $region3: #{tpu_custom_call.1} parent=1 // pred_check_branch
      %18 = sbr.rel (0) target = $region5
    $region4: #{tpu_custom_call.1} parent=1 // pred_region
      %s20 = ssub.s32 256, 256
      %21 = vsyncadd [#allocation3], %s20
      %s22 = sshll.u32 [#allocation2], 4
      %s23 = int_to_ptr.vmem [resolvable:$true] %s22
      %28 = dma.hbm_to_vmem [thread:$0]  %s0, 256, %s23, [#allocation3], 128, 128, 8
    $region5: #{tpu_custom_call.1} parent=1 // pred_fallthru
      _
    // Predicated region
    $region6: #{tpu_custom_call.1} parent=1 // pred_check
      _
    $region7: #{tpu_custom_call.1} parent=1 // pred_check_branch
      %30 = sbr.rel (0) target = $region9
    $region8: #{tpu_custom_call.1} parent=1 // pred_region
      %s32 = ssub.s32 10240, 10240
      %33 = vsyncadd [#allocation6], %s32
      %s34 = sshll.u32 [#allocation5], 4
      %s35 = int_to_ptr.vmem [resolvable:$true] %s34
      %40 = dma.hbm_to_vmem [thread:$0]  %s1, 10240, %s35, [#allocation6], 640, 640, 40
    $region9: #{tpu_custom_call.1} parent=1 // pred_fallthru
      _
    // Predicated region
    $region10: #{tpu_custom_call.1} parent=1 // pred_check
      _
    $region11: #{tpu_custom_call.1} parent=1 // pred_check_branch
      %42 = sbr.rel (0) target = $region13
    $region12: #{tpu_custom_call.1} parent=1 // pred_region
      %s44 = ssub.s32 80, 80
      %45 = vsyncadd [#allocation6], %s44
      %s47 = sshll.u32 [#allocation7], 4
      %s48 = int_to_ptr.vmem [resolvable:$true] %s47
      %50 = dma.hbm_to_vmem [thread:$0]  %s2, 80, %s48, [#allocation6]
    $region13: #{tpu_custom_call.1} parent=1 // pred_fallthru
      _
    // Predicated region
    $region14: #{tpu_custom_call.1} parent=1 // pred_check
      _
    $region15: #{tpu_custom_call.1} parent=1 // pred_check_branch
      %52 = sbr.rel (0) target = $region17
    $region16: #{tpu_custom_call.1} parent=1 // pred_region
      %s54 = ssub.s32 10240, 10240
      %55 = vsyncadd [#allocation9], %s54
      %s56 = sshll.u32 [#allocation8], 4
      %s57 = int_to_ptr.vmem [resolvable:$true] %s56
      %62 = dma.hbm_to_vmem [thread:$0]  %s3, 10240, %s57, [#allocation9], 128, 128, 8
    $region17: #{tpu_custom_call.1} parent=1 // pred_fallthru
      _
    // Predicated region
    $region18: #{tpu_custom_call.1} parent=1 // pred_check
      _
    $region19: #{tpu_custom_call.1} parent=1 // pred_check_branch
      %64 = sbr.rel (0) target = $region21
    $region20: #{tpu_custom_call.1} parent=1 // pred_region
      _
    $region21: #{tpu_custom_call.1} parent=1 // pred_fallthru
      _
    // Predicated region
    $region22: #{tpu_custom_call.1} parent=1 // pred_check
      _
    $region23: #{tpu_custom_call.1} parent=1 // pred_check_branch
      %66 = sbr.rel (0) target = $region25
    $region24: #{tpu_custom_call.1} parent=1 // pred_region
      %67 = dma.done [#allocation3], 256
    $region25: #{tpu_custom_call.1} parent=1 // pred_fallthru
      _
    // Predicated region
    $region26: #{tpu_custom_call.1} parent=1 // pred_check
      _
    $region27: #{tpu_custom_call.1} parent=1 // pred_check_branch
      %69 = sbr.rel (0) target = $region29
    $region28: #{tpu_custom_call.1} parent=1 // pred_region
      %70 = dma.done [#allocation6], 10240
    $region29: #{tpu_custom_call.1} parent=1 // pred_fallthru
      _
    // Predicated region
    $region30: #{tpu_custom_call.1} parent=1 // pred_check
      _
    $region31: #{tpu_custom_call.1} parent=1 // pred_check_branch
      %72 = sbr.rel (0) target = $region33
    $region32: #{tpu_custom_call.1} parent=1 // pred_region
      %73 = dma.done [#allocation6], 80
    $region33: #{tpu_custom_call.1} parent=1 // pred_fallthru
      _
    // Predicated region
    $region34: #{tpu_custom_call.1} parent=1 // pred_check
      _
    $region35: #{tpu_custom_call.1} parent=1 // pred_check_branch
      %75 = sbr.rel (0) target = $region37
    $region36: #{tpu_custom_call.1} parent=1 // pred_region
      %76 = dma.done [#allocation9], 10240
    $region37: #{tpu_custom_call.1} parent=1 // pred_fallthru
      _
    %v77 = vld [vmem:[#allocation2] sm:$0xff]
    %v78 = vld [vmem:[#allocation2 + $0x8] sm:$0xff]
    %v79 = vld [vmem:[#allocation5] sm:$0xff]
    %v80 = vld [vmem:[#allocation5 + $0x8] sm:$0xff]
    %v81 = vld [vmem:[#allocation5 + $0x10] sm:$0xff]
    %v82 = vld [vmem:[#allocation5 + $0x18] sm:$0xff]
    %v83 = vld [vmem:[#allocation5 + $0x20] sm:$0xff]
    %v84 = vld [vmem:[#allocation5 + $0x28] sm:$0xff]
    %v85 = vld [vmem:[#allocation5 + $0x30] sm:$0xff]
    %v86 = vld [vmem:[#allocation5 + $0x38] sm:$0xff]
    %v87 = vld [vmem:[#allocation5 + $0x40] sm:$0xff]
    %v88 = vld [vmem:[#allocation5 + $0x48] sm:$0xff]
    %v89 = vld [vmem:[#allocation5 + $0x50] sm:$0xff]
    %v90 = vld [vmem:[#allocation5 + $0x58] sm:$0xff]
    %v91 = vld [vmem:[#allocation5 + $0x60] sm:$0xff]
    %v92 = vld [vmem:[#allocation5 + $0x68] sm:$0xff]
    %v93 = vld [vmem:[#allocation5 + $0x70] sm:$0xff]
    %v94 = vld [vmem:[#allocation5 + $0x78] sm:$0xff]
    %v95 = vld [vmem:[#allocation5 + $0x80] sm:$0xff]
    %v96 = vld [vmem:[#allocation5 + $0x88] sm:$0xff]
    %v97 = vld [vmem:[#allocation5 + $0x90] sm:$0xff]
    %v98 = vld [vmem:[#allocation5 + $0x98] sm:$0xff]
    %v99 = vld [vmem:[#allocation5 + $0xa0] sm:$0xff]
    %v100 = vld [vmem:[#allocation5 + $0xa8] sm:$0xff]
    %v101 = vld [vmem:[#allocation5 + $0xb0] sm:$0xff]
    %v102 = vld [vmem:[#allocation5 + $0xb8] sm:$0xff]
    %v103 = vld [vmem:[#allocation5 + $0xc0] sm:$0xff]
    %v104 = vld [vmem:[#allocation5 + $0xc8] sm:$0xff]
    %v105 = vld [vmem:[#allocation5 + $0xd0] sm:$0xff]
    %v106 = vld [vmem:[#allocation5 + $0xd8] sm:$0xff]
    %v107 = vld [vmem:[#allocation5 + $0xe0] sm:$0xff]
    %v108 = vld [vmem:[#allocation5 + $0xe8] sm:$0xff]
    %v109 = vld [vmem:[#allocation5 + $0xf0] sm:$0xff]
    %v110 = vld [vmem:[#allocation5 + $0xf8] sm:$0xff]
    %v111 = vld [vmem:[#allocation5 + $0x100] sm:$0xff]
    %v112 = vld [vmem:[#allocation5 + $0x108] sm:$0xff]
    %v113 = vld [vmem:[#allocation5 + $0x110] sm:$0xff]
    %v114 = vld [vmem:[#allocation5 + $0x118] sm:$0xff]
    %v115 = vld [vmem:[#allocation5 + $0x120] sm:$0xff]
    %v116 = vld [vmem:[#allocation5 + $0x128] sm:$0xff]
    %v117 = vld [vmem:[#allocation5 + $0x130] sm:$0xff]
    %v118 = vld [vmem:[#allocation5 + $0x138] sm:$0xff]
    %v119 = vld [vmem:[#allocation5 + $0x140] sm:$0xff]
    %v120 = vld [vmem:[#allocation5 + $0x148] sm:$0xff]
    %v121 = vld [vmem:[#allocation5 + $0x150] sm:$0xff]
    %v122 = vld [vmem:[#allocation5 + $0x158] sm:$0xff]
    %v123 = vld [vmem:[#allocation5 + $0x160] sm:$0xff]
    %v124 = vld [vmem:[#allocation5 + $0x168] sm:$0xff]
    %v125 = vld [vmem:[#allocation5 + $0x170] sm:$0xff]
    %v126 = vld [vmem:[#allocation5 + $0x178] sm:$0xff]
    %v127 = vld [vmem:[#allocation5 + $0x180] sm:$0xff]
    %v128 = vld [vmem:[#allocation5 + $0x188] sm:$0xff]
    %v129 = vld [vmem:[#allocation5 + $0x190] sm:$0xff]
    %v130 = vld [vmem:[#allocation5 + $0x198] sm:$0xff]
    %v131 = vld [vmem:[#allocation5 + $0x1a0] sm:$0xff]
    %v132 = vld [vmem:[#allocation5 + $0x1a8] sm:$0xff]
    %v133 = vld [vmem:[#allocation5 + $0x1b0] sm:$0xff]
    %v134 = vld [vmem:[#allocation5 + $0x1b8] sm:$0xff]
    %v135 = vld [vmem:[#allocation5 + $0x1c0] sm:$0xff]
    %v136 = vld [vmem:[#allocation5 + $0x1c8] sm:$0xff]
    %v137 = vld [vmem:[#allocation5 + $0x1d0] sm:$0xff]
    %v138 = vld [vmem:[#allocation5 + $0x1d8] sm:$0xff]
    %v139 = vld [vmem:[#allocation5 + $0x1e0] sm:$0xff]
    %v140 = vld [vmem:[#allocation5 + $0x1e8] sm:$0xff]
    %v141 = vld [vmem:[#allocation5 + $0x1f0] sm:$0xff]
    %v142 = vld [vmem:[#allocation5 + $0x1f8] sm:$0xff]
    %v143 = vld [vmem:[#allocation5 + $0x200] sm:$0xff]
    %v144 = vld [vmem:[#allocation5 + $0x208] sm:$0xff]
    %v145 = vld [vmem:[#allocation5 + $0x210] sm:$0xff]
    %v146 = vld [vmem:[#allocation5 + $0x218] sm:$0xff]
    %v147 = vld [vmem:[#allocation5 + $0x220] sm:$0xff]
    %v148 = vld [vmem:[#allocation5 + $0x228] sm:$0xff]
    %v149 = vld [vmem:[#allocation5 + $0x230] sm:$0xff]
    %v150 = vld [vmem:[#allocation5 + $0x238] sm:$0xff]
    %v151 = vld [vmem:[#allocation5 + $0x240] sm:$0xff]
    %v152 = vld [vmem:[#allocation5 + $0x248] sm:$0xff]
    %v153 = vld [vmem:[#allocation5 + $0x250] sm:$0xff]
    %v154 = vld [vmem:[#allocation5 + $0x258] sm:$0xff]
    %v155 = vld [vmem:[#allocation5 + $0x260] sm:$0xff]
    %v156 = vld [vmem:[#allocation5 + $0x268] sm:$0xff]
    %v157 = vld [vmem:[#allocation5 + $0x270] sm:$0xff]
    %v158 = vld [vmem:[#allocation5 + $0x278] sm:$0xff]
    %v159 = vld [vmem:[#allocation7] sm:$0x1f]
    %v161 = vlaneseq
    %v162 = vshrl.u32 %v161, 7
    %v163 = vsub.s32 0, %v162
    %v164 = vrot.slane %v159, %v163
    %v165 = vlaneseq
    %v166 = vshrl.u32 %v165, 7
    %v167 = vsub.s32 1, %v166
    %v168 = vrot.slane %v159, %v167
    %v169 = vlaneseq
    %v170 = vshrl.u32 %v169, 7
    %v171 = vsub.s32 2, %v170
    %v172 = vrot.slane %v159, %v171
    %v173 = vlaneseq
    %v174 = vshrl.u32 %v173, 7
    %v175 = vsub.s32 3, %v174
    %v176 = vrot.slane %v159, %v175
    %v177 = vlaneseq
    %v178 = vshrl.u32 %v177, 7
    %v179 = vsub.s32 4, %v178
    %v180 = vrot.slane %v159, %v179
    %186 = vmatprep.subr.mxu0 %v155
    %187 = vmatpush1.msra.mxu0 %v154
    %188 = vmatprep.subr.mxu0 %v150
    %189 = vmatpush1.msra.mxu0 %v149
    %190 = vmatprep.subr.mxu0 %v145
    %191 = vmatpush1.msra.mxu0 %v144
    %192 = vmatprep.subr.mxu0 %v140
    %193 = vmatpush1.msra.mxu0 %v139
    %194 = vmatprep.subr.mxu0 %v135
    %195 = vmatpush1.msra.mxu0 %v134
    %196 = vmatprep.subr.mxu0 %v130
    %197 = vmatpush1.msra.mxu0 %v129
    %198 = vmatprep.subr.mxu0 %v125
    %199 = vmatpush1.msra.mxu0 %v124
    %200 = vmatprep.subr.mxu0 %v120
    %201 = vmatpush1.msra.mxu0 %v119
    %202 = vmatprep.subr.mxu0 %v115
    %203 = vmatpush1.msra.mxu0 %v114
    %204 = vmatprep.subr.mxu0 %v110
    %205 = vmatpush1.msra.mxu0 %v109
    %206 = vmatprep.subr.mxu0 %v105
    %207 = vmatpush1.msra.mxu0 %v104
    %208 = vmatprep.subr.mxu0 %v100
    %209 = vmatpush1.msra.mxu0 %v99
    %210 = vmatprep.subr.mxu0 %v95
    %211 = vmatpush1.msra.mxu0 %v94
    %212 = vmatprep.subr.mxu0 %v90
    %213 = vmatpush1.msra.mxu0 %v89
    %214 = vmatprep.subr.mxu0 %v85
    %215 = vmatpush1.msra.mxu0 %v84
    %216 = vmatprep.subr.mxu0 %v80
    %217 = vmatpush1.msra.mxu0 %v79
    %218 = vmatprep.subr.mxu0 0.0
    %219 = vmatpush2.msra.mxu0 0.0
    %220 = vmatprep.subr.mxu0 0.0
    %221 = vmatpush2.msra.mxu0 0.0
    %222 = vmatprep.subr.mxu0 0.0
    %223 = vmatpush2.msra.mxu0 0.0
    %224 = vmatprep.subr.mxu0 0.0
    %225 = vmatpush2.msra.mxu0 0.0
    %226 = vmatprep.subr.mxu0 0.0
    %227 = vmatpush2.msra.mxu0 0.0
    %228 = vmatprep.subr.mxu0 0.0
    %229 = vmatpush2.msra.mxu0 0.0
    %230 = vmatprep.subr.mxu0 0.0
    %231 = vmatpush2.msra.mxu0 0.0
    %232 = vmatprep.subr.mxu0 0.0
    %233 = vmatpush2.msra.mxu0 0.0
    %234 = vmatprep.subr.mxu0 0.0
    %235 = vmatpush2.msra.mxu0 0.0
    %236 = vmatprep.subr.mxu0 0.0
    %237 = vmatpush2.msra.mxu0 0.0
    %238 = vmatprep.subr.mxu0 0.0
    %239 = vmatpush2.msra.mxu0 0.0
    %240 = vmatprep.subr.mxu0 0.0
    %241 = vmatpush2.msra.mxu0 0.0
    %242 = vmatprep.subr.mxu0 0.0
    %243 = vmatpush2.msra.mxu0 0.0
    %244 = vmatprep.subr.mxu0 0.0
    %245 = vmatpush2.msra.mxu0 0.0
    %246 = vmatprep.subr.mxu0 0.0
    %247 = vmatpush2.msra.mxu0 0.0
    %248 = vmatprep.subr.mxu0 0.0
    %249 = vmatpush2.msra.mxu0 0.0
    %250 = vmatprep.mubr.f32.mxu0 0.0
    %251 = vmatmul.mubr.f32.gmra.mxu0 %v77
    %v252 = vpop.f32.mrf.mxu0
    %v253 = vadd.f32 %v164, %v252
    %v254 = vpop.f32.mrf.mxu0
    %v255 = vadd.f32 %v168, %v254
    %256 = vmatprep.mubr.f32.mxu0 0.0
    %257 = vmatmul.mubr.f32.gmra.mxu0 %v78
    %v258 = vpop.f32.mrf.mxu0
    %v259 = vadd.f32 %v164, %v258
    %v260 = vpop.f32.mrf.mxu0
    %v261 = vadd.f32 %v168, %v260
    %262 = vdwg.mxu0
    %263 = vmatprep.subr.mxu0 %v157
    %264 = vmatpush1.msra.mxu0 %v156
    %265 = vmatprep.subr.mxu0 %v152
    %266 = vmatpush1.msra.mxu0 %v151
    %267 = vmatprep.subr.mxu0 %v147
    %268 = vmatpush1.msra.mxu0 %v146
    %269 = vmatprep.subr.mxu0 %v142
    %270 = vmatpush1.msra.mxu0 %v141
    %271 = vmatprep.subr.mxu0 %v137
    %272 = vmatpush1.msra.mxu0 %v136
    %273 = vmatprep.subr.mxu0 %v132
    %274 = vmatpush1.msra.mxu0 %v131
    %275 = vmatprep.subr.mxu0 %v127
    %276 = vmatpush1.msra.mxu0 %v126
    %277 = vmatprep.subr.mxu0 %v122
    %278 = vmatpush1.msra.mxu0 %v121
    %279 = vmatprep.subr.mxu0 %v117
    %280 = vmatpush1.msra.mxu0 %v116
    %281 = vmatprep.subr.mxu0 %v112
    %282 = vmatpush1.msra.mxu0 %v111
    %283 = vmatprep.subr.mxu0 %v107
    %284 = vmatpush1.msra.mxu0 %v106
    %285 = vmatprep.subr.mxu0 %v102
    %286 = vmatpush1.msra.mxu0 %v101
    %287 = vmatprep.subr.mxu0 %v97
    %288 = vmatpush1.msra.mxu0 %v96
    %289 = vmatprep.subr.mxu0 %v92
    %290 = vmatpush1.msra.mxu0 %v91
    %291 = vmatprep.subr.mxu0 %v87
    %292 = vmatpush1.msra.mxu0 %v86
    %293 = vmatprep.subr.mxu0 %v82
    %294 = vmatpush1.msra.mxu0 %v81
    %295 = vmatprep.subr.mxu0 0.0
    %296 = vmatpush2.msra.mxu0 0.0
    %297 = vmatprep.subr.mxu0 0.0
    %298 = vmatpush2.msra.mxu0 0.0
    %299 = vmatprep.subr.mxu0 0.0
    %300 = vmatpush2.msra.mxu0 0.0
    %301 = vmatprep.subr.mxu0 0.0
    %302 = vmatpush2.msra.mxu0 0.0
    %303 = vmatprep.subr.mxu0 0.0
    %304 = vmatpush2.msra.mxu0 0.0
    %305 = vmatprep.subr.mxu0 0.0
    %306 = vmatpush2.msra.mxu0 0.0
    %307 = vmatprep.subr.mxu0 0.0
    %308 = vmatpush2.msra.mxu0 0.0
    %309 = vmatprep.subr.mxu0 0.0
    %310 = vmatpush2.msra.mxu0 0.0
    %311 = vmatprep.subr.mxu0 0.0
    %312 = vmatpush2.msra.mxu0 0.0
    %313 = vmatprep.subr.mxu0 0.0
    %314 = vmatpush2.msra.mxu0 0.0
    %315 = vmatprep.subr.mxu0 0.0
    %316 = vmatpush2.msra.mxu0 0.0
    %317 = vmatprep.subr.mxu0 0.0
    %318 = vmatpush2.msra.mxu0 0.0
    %319 = vmatprep.subr.mxu0 0.0
    %320 = vmatpush2.msra.mxu0 0.0
    %321 = vmatprep.subr.mxu0 0.0
    %322 = vmatpush2.msra.mxu0 0.0
    %323 = vmatprep.subr.mxu0 0.0
    %324 = vmatpush2.msra.mxu0 0.0
    %325 = vmatprep.subr.mxu0 0.0
    %326 = vmatpush2.msra.mxu0 0.0
    %327 = vmatprep.mubr.f32.mxu0 0.0
    %328 = vmatmul.mubr.f32.gmra.mxu0 %v77
    %v329 = vpop.f32.mrf.mxu0
    %v330 = vadd.f32 %v172, %v329
    %v331 = vpop.f32.mrf.mxu0
    %v332 = vadd.f32 %v176, %v331
    %333 = vmatprep.mubr.f32.mxu0 0.0
    %334 = vmatmul.mubr.f32.gmra.mxu0 %v78
    %v335 = vpop.f32.mrf.mxu0
    %v336 = vadd.f32 %v172, %v335
    %v337 = vpop.f32.mrf.mxu0
    %v338 = vadd.f32 %v176, %v337
    %339 = vdwg.mxu0
    %340 = vmatprep.subr.mxu0 0.0
    %341 = vmatpush1.msra.mxu0 %v158
    %342 = vmatprep.subr.mxu0 0.0
    %343 = vmatpush1.msra.mxu0 %v153
    %344 = vmatprep.subr.mxu0 0.0
    %345 = vmatpush1.msra.mxu0 %v148
    %346 = vmatprep.subr.mxu0 0.0
    %347 = vmatpush1.msra.mxu0 %v143
    %348 = vmatprep.subr.mxu0 0.0
    %349 = vmatpush1.msra.mxu0 %v138
    %350 = vmatprep.subr.mxu0 0.0
    %351 = vmatpush1.msra.mxu0 %v133
    %352 = vmatprep.subr.mxu0 0.0
    %353 = vmatpush1.msra.mxu0 %v128
    %354 = vmatprep.subr.mxu0 0.0
    %355 = vmatpush1.msra.mxu0 %v123
    %356 = vmatprep.subr.mxu0 0.0
    %357 = vmatpush1.msra.mxu0 %v118
    %358 = vmatprep.subr.mxu0 0.0
    %359 = vmatpush1.msra.mxu0 %v113
    %360 = vmatprep.subr.mxu0 0.0
    %361 = vmatpush1.msra.mxu0 %v108
    %362 = vmatprep.subr.mxu0 0.0
    %363 = vmatpush1.msra.mxu0 %v103
    %364 = vmatprep.subr.mxu0 0.0
    %365 = vmatpush1.msra.mxu0 %v98
    %366 = vmatprep.subr.mxu0 0.0
    %367 = vmatpush1.msra.mxu0 %v93
    %368 = vmatprep.subr.mxu0 0.0
    %369 = vmatpush1.msra.mxu0 %v88
    %370 = vmatprep.subr.mxu0 0.0
    %371 = vmatpush1.msra.mxu0 %v83
    %372 = vmatprep.subr.mxu0 0.0
    %373 = vmatpush2.msra.mxu0 0.0
    %374 = vmatprep.subr.mxu0 0.0
    %375 = vmatpush2.msra.mxu0 0.0
    %376 = vmatprep.subr.mxu0 0.0
    %377 = vmatpush2.msra.mxu0 0.0
    %378 = vmatprep.subr.mxu0 0.0
    %379 = vmatpush2.msra.mxu0 0.0
    %380 = vmatprep.subr.mxu0 0.0
    %381 = vmatpush2.msra.mxu0 0.0
    %382 = vmatprep.subr.mxu0 0.0
    %383 = vmatpush2.msra.mxu0 0.0
    %384 = vmatprep.subr.mxu0 0.0
    %385 = vmatpush2.msra.mxu0 0.0
    %386 = vmatprep.subr.mxu0 0.0
    %387 = vmatpush2.msra.mxu0 0.0
    %388 = vmatprep.subr.mxu0 0.0
    %389 = vmatpush2.msra.mxu0 0.0
    %390 = vmatprep.subr.mxu0 0.0
    %391 = vmatpush2.msra.mxu0 0.0
    %392 = vmatprep.subr.mxu0 0.0
    %393 = vmatpush2.msra.mxu0 0.0
    %394 = vmatprep.subr.mxu0 0.0
    %395 = vmatpush2.msra.mxu0 0.0
    %396 = vmatprep.subr.mxu0 0.0
    %397 = vmatpush2.msra.mxu0 0.0
    %398 = vmatprep.subr.mxu0 0.0
    %399 = vmatpush2.msra.mxu0 0.0
    %400 = vmatprep.subr.mxu0 0.0
    %401 = vmatpush2.msra.mxu0 0.0
    %402 = vmatprep.subr.mxu0 0.0
    %403 = vmatpush2.msra.mxu0 0.0
    %404 = vmatprep.mubr.f32.mxu0 0.0
    %405 = vmatmul.mubr.f32.gmra.mxu0 %v77
    %v406 = vpop.f32.mrf.mxu0
    %v407 = vadd.f32 %v180, %v406
    %v408 = vpop.f32.mrf.mxu0
    %409 = vmatprep.mubr.f32.mxu0 0.0
    %410 = vmatmul.mubr.f32.gmra.mxu0 %v78
    %v411 = vpop.f32.mrf.mxu0
    %v412 = vadd.f32 %v180, %v411
    %v413 = vpop.f32.mrf.mxu0
    %414 = vdwg.mxu0
    %v415 = vmax.f32 %v253, 0.0
    %v416 = vmax.f32 %v255, 0.0
    %v417 = vmax.f32 %v330, 0.0
    %v418 = vmax.f32 %v332, 0.0
    %v419 = vmax.f32 %v407, 0.0
    %v420 = vmax.f32 %v259, 0.0
    %v421 = vmax.f32 %v261, 0.0
    %v422 = vmax.f32 %v336, 0.0
    %v423 = vmax.f32 %v338, 0.0
    %v424 = vmax.f32 %v412, 0.0
    %425 = vst [vmem:[#allocation10] sm:$0xff] %v415
    %426 = vst [vmem:[#allocation10 + $0x8] sm:$0xff] %v416
    %427 = vst [vmem:[#allocation10 + $0x10] sm:$0xff] %v417
    %428 = vst [vmem:[#allocation10 + $0x18] sm:$0xff] %v418
    %429 = vst [vmem:[#allocation10 + $0x20] sm:$0xff] %v419
    %430 = vst [vmem:[#allocation10 + $0x28] sm:$0xff] %v420
    %431 = vst [vmem:[#allocation10 + $0x30] sm:$0xff] %v421
    %432 = vst [vmem:[#allocation10 + $0x38] sm:$0xff] %v422
    %433 = vst [vmem:[#allocation10 + $0x40] sm:$0xff] %v423
    %434 = vst [vmem:[#allocation10 + $0x48] sm:$0xff] %v424
    %v435 = vld [vmem:[#allocation8] sm:$0xff]
    %v436 = vld [vmem:[#allocation8 + $0x8] sm:$0xff]
    %v437 = vld [vmem:[#allocation8 + $0x10] sm:$0xff]
    %v438 = vld [vmem:[#allocation8 + $0x18] sm:$0xff]
    %v439 = vld [vmem:[#allocation8 + $0x20] sm:$0xff]
    %v440 = vld [vmem:[#allocation8 + $0x28] sm:$0xff]
    %v441 = vld [vmem:[#allocation8 + $0x30] sm:$0xff]
    %v442 = vld [vmem:[#allocation8 + $0x38] sm:$0xff]
    %v443 = vld [vmem:[#allocation8 + $0x40] sm:$0xff]
    %v444 = vld [vmem:[#allocation8 + $0x48] sm:$0xff]
    %v445 = vld [vmem:[#allocation8 + $0x50] sm:$0xff]
    %v446 = vld [vmem:[#allocation8 + $0x58] sm:$0xff]
    %v447 = vld [vmem:[#allocation8 + $0x60] sm:$0xff]
    %v448 = vld [vmem:[#allocation8 + $0x68] sm:$0xff]
    %v449 = vld [vmem:[#allocation8 + $0x70] sm:$0xff]
    %v450 = vld [vmem:[#allocation8 + $0x78] sm:$0xff]
    %v451 = vld [vmem:[#allocation8 + $0x80] sm:$0xff]
    %v452 = vld [vmem:[#allocation8 + $0x88] sm:$0xff]
    %v453 = vld [vmem:[#allocation8 + $0x90] sm:$0xff]
    %v454 = vld [vmem:[#allocation8 + $0x98] sm:$0xff]
    %v455 = vld [vmem:[#allocation8 + $0xa0] sm:$0xff]
    %v456 = vld [vmem:[#allocation8 + $0xa8] sm:$0xff]
    %v457 = vld [vmem:[#allocation8 + $0xb0] sm:$0xff]
    %v458 = vld [vmem:[#allocation8 + $0xb8] sm:$0xff]
    %v459 = vld [vmem:[#allocation8 + $0xc0] sm:$0xff]
    %v460 = vld [vmem:[#allocation8 + $0xc8] sm:$0xff]
    %v461 = vld [vmem:[#allocation8 + $0xd0] sm:$0xff]
    %v462 = vld [vmem:[#allocation8 + $0xd8] sm:$0xff]
    %v463 = vld [vmem:[#allocation8 + $0xe0] sm:$0xff]
    %v464 = vld [vmem:[#allocation8 + $0xe8] sm:$0xff]
    %v465 = vld [vmem:[#allocation8 + $0xf0] sm:$0xff]
    %v466 = vld [vmem:[#allocation8 + $0xf8] sm:$0xff]
    %v467 = vld [vmem:[#allocation8 + $0x100] sm:$0xff]
    %v468 = vld [vmem:[#allocation8 + $0x108] sm:$0xff]
    %v469 = vld [vmem:[#allocation8 + $0x110] sm:$0xff]
    %v470 = vld [vmem:[#allocation8 + $0x118] sm:$0xff]
    %v471 = vld [vmem:[#allocation8 + $0x120] sm:$0xff]
    %v472 = vld [vmem:[#allocation8 + $0x128] sm:$0xff]
    %v473 = vld [vmem:[#allocation8 + $0x130] sm:$0xff]
    %v474 = vld [vmem:[#allocation8 + $0x138] sm:$0xff]
    %v475 = vld [vmem:[#allocation8 + $0x140] sm:$0xff]
    %v476 = vld [vmem:[#allocation8 + $0x148] sm:$0xff]
    %v477 = vld [vmem:[#allocation8 + $0x150] sm:$0xff]
    %v478 = vld [vmem:[#allocation8 + $0x158] sm:$0xff]
    %v479 = vld [vmem:[#allocation8 + $0x160] sm:$0xff]
    %v480 = vld [vmem:[#allocation8 + $0x168] sm:$0xff]
    %v481 = vld [vmem:[#allocation8 + $0x170] sm:$0xff]
    %v482 = vld [vmem:[#allocation8 + $0x178] sm:$0xff]
    %v483 = vld [vmem:[#allocation8 + $0x180] sm:$0xff]
    %v484 = vld [vmem:[#allocation8 + $0x188] sm:$0xff]
    %v485 = vld [vmem:[#allocation8 + $0x190] sm:$0xff]
    %v486 = vld [vmem:[#allocation8 + $0x198] sm:$0xff]
    %v487 = vld [vmem:[#allocation8 + $0x1a0] sm:$0xff]
    %v488 = vld [vmem:[#allocation8 + $0x1a8] sm:$0xff]
    %v489 = vld [vmem:[#allocation8 + $0x1b0] sm:$0xff]
    %v490 = vld [vmem:[#allocation8 + $0x1b8] sm:$0xff]
    %v491 = vld [vmem:[#allocation8 + $0x1c0] sm:$0xff]
    %v492 = vld [vmem:[#allocation8 + $0x1c8] sm:$0xff]
    %v493 = vld [vmem:[#allocation8 + $0x1d0] sm:$0xff]
    %v494 = vld [vmem:[#allocation8 + $0x1d8] sm:$0xff]
    %v495 = vld [vmem:[#allocation8 + $0x1e0] sm:$0xff]
    %v496 = vld [vmem:[#allocation8 + $0x1e8] sm:$0xff]
    %v497 = vld [vmem:[#allocation8 + $0x1f0] sm:$0xff]
    %v498 = vld [vmem:[#allocation8 + $0x1f8] sm:$0xff]
    %v499 = vld [vmem:[#allocation8 + $0x200] sm:$0xff]
    %v500 = vld [vmem:[#allocation8 + $0x208] sm:$0xff]
    %v501 = vld [vmem:[#allocation8 + $0x210] sm:$0xff]
    %v502 = vld [vmem:[#allocation8 + $0x218] sm:$0xff]
    %v503 = vld [vmem:[#allocation8 + $0x220] sm:$0xff]
    %v504 = vld [vmem:[#allocation8 + $0x228] sm:$0xff]
    %v505 = vld [vmem:[#allocation8 + $0x230] sm:$0xff]
    %v506 = vld [vmem:[#allocation8 + $0x238] sm:$0xff]
    %v507 = vld [vmem:[#allocation8 + $0x240] sm:$0xff]
    %v508 = vld [vmem:[#allocation8 + $0x248] sm:$0xff]
    %v509 = vld [vmem:[#allocation8 + $0x250] sm:$0xff]
    %v510 = vld [vmem:[#allocation8 + $0x258] sm:$0xff]
    %v511 = vld [vmem:[#allocation8 + $0x260] sm:$0xff]
    %v512 = vld [vmem:[#allocation8 + $0x268] sm:$0xff]
    %v513 = vld [vmem:[#allocation8 + $0x270] sm:$0xff]
    %v514 = vld [vmem:[#allocation8 + $0x278] sm:$0xff]
    %v515 = vld [vmem:[%s4] sm:$0x1]
    %v517 = vlaneseq
    %v518 = vshrl.u32 %v517, 7
    %v519 = vsub.s32 0, %v518
    %v520 = vrot.slane %v515, %v519
    %522 = vmatprep.subr.mxu0 0.0
    %523 = vmatpush1.msra.mxu0 %v450
    %524 = vmatprep.subr.mxu0 0.0
    %525 = vmatpush1.msra.mxu0 %v449
    %526 = vmatprep.subr.mxu0 0.0
    %527 = vmatpush1.msra.mxu0 %v448
    %528 = vmatprep.subr.mxu0 0.0
    %529 = vmatpush1.msra.mxu0 %v447
    %530 = vmatprep.subr.mxu0 0.0
    %531 = vmatpush1.msra.mxu0 %v446
    %532 = vmatprep.subr.mxu0 0.0
    %533 = vmatpush1.msra.mxu0 %v445
    %534 = vmatprep.subr.mxu0 0.0
    %535 = vmatpush1.msra.mxu0 %v444
    %536 = vmatprep.subr.mxu0 0.0
    %537 = vmatpush1.msra.mxu0 %v443
    %538 = vmatprep.subr.mxu0 0.0
    %539 = vmatpush1.msra.mxu0 %v442
    %540 = vmatprep.subr.mxu0 0.0
    %541 = vmatpush1.msra.mxu0 %v441
    %542 = vmatprep.subr.mxu0 0.0
    %543 = vmatpush1.msra.mxu0 %v440
    %544 = vmatprep.subr.mxu0 0.0
    %545 = vmatpush1.msra.mxu0 %v439
    %546 = vmatprep.subr.mxu0 0.0
    %547 = vmatpush1.msra.mxu0 %v438
    %548 = vmatprep.subr.mxu0 0.0
    %549 = vmatpush1.msra.mxu0 %v437
    %550 = vmatprep.subr.mxu0 0.0
    %551 = vmatpush1.msra.mxu0 %v436
    %552 = vmatprep.subr.mxu0 0.0
    %553 = vmatpush1.msra.mxu0 %v435
    %554 = vmatprep.subr.mxu0 0.0
    %555 = vmatpush2.msra.mxu0 %v466
    %556 = vmatprep.subr.mxu0 0.0
    %557 = vmatpush2.msra.mxu0 %v465
    %558 = vmatprep.subr.mxu0 0.0
    %559 = vmatpush2.msra.mxu0 %v464
    %560 = vmatprep.subr.mxu0 0.0
    %561 = vmatpush2.msra.mxu0 %v463
    %562 = vmatprep.subr.mxu0 0.0
    %563 = vmatpush2.msra.mxu0 %v462
    %564 = vmatprep.subr.mxu0 0.0
    %565 = vmatpush2.msra.mxu0 %v461
    %566 = vmatprep.subr.mxu0 0.0
    %567 = vmatpush2.msra.mxu0 %v460
    %568 = vmatprep.subr.mxu0 0.0
    %569 = vmatpush2.msra.mxu0 %v459
    %570 = vmatprep.subr.mxu0 0.0
    %571 = vmatpush2.msra.mxu0 %v458
    %572 = vmatprep.subr.mxu0 0.0
    %573 = vmatpush2.msra.mxu0 %v457
    %574 = vmatprep.subr.mxu0 0.0
    %575 = vmatpush2.msra.mxu0 %v456
    %576 = vmatprep.subr.mxu0 0.0
    %577 = vmatpush2.msra.mxu0 %v455
    %578 = vmatprep.subr.mxu0 0.0
    %579 = vmatpush2.msra.mxu0 %v454
    %580 = vmatprep.subr.mxu0 0.0
    %581 = vmatpush2.msra.mxu0 %v453
    %582 = vmatprep.subr.mxu0 0.0
    %583 = vmatpush2.msra.mxu0 %v452
    %584 = vmatprep.subr.mxu0 0.0
    %585 = vmatpush2.msra.mxu0 %v451
    %586 = vmatprep.mubr.f32.mxu0 %v416
    %587 = vmatmul.mubr.f32.gmra.mxu0 %v415
    %v588 = vpop.f32.mrf.mxu0
    %v589 = vadd.f32 %v520, %v588
    %v590 = vpop.f32.mrf.mxu0
    %591 = vmatprep.mubr.f32.mxu0 %v421
    %592 = vmatmul.mubr.f32.gmra.mxu0 %v420
    %v593 = vpop.f32.mrf.mxu0
    %v594 = vadd.f32 %v520, %v593
    %v595 = vpop.f32.mrf.mxu0
    %596 = vdwg.mxu0
    %597 = vmatprep.subr.mxu0 0.0
    %598 = vmatpush1.msra.mxu0 %v482
    %599 = vmatprep.subr.mxu0 0.0
    %600 = vmatpush1.msra.mxu0 %v481
    %601 = vmatprep.subr.mxu0 0.0
    %602 = vmatpush1.msra.mxu0 %v480
    %603 = vmatprep.subr.mxu0 0.0
    %604 = vmatpush1.msra.mxu0 %v479
    %605 = vmatprep.subr.mxu0 0.0
    %606 = vmatpush1.msra.mxu0 %v478
    %607 = vmatprep.subr.mxu0 0.0
    %608 = vmatpush1.msra.mxu0 %v477
    %609 = vmatprep.subr.mxu0 0.0
    %610 = vmatpush1.msra.mxu0 %v476
    %611 = vmatprep.subr.mxu0 0.0
    %612 = vmatpush1.msra.mxu0 %v475
    %613 = vmatprep.subr.mxu0 0.0
    %614 = vmatpush1.msra.mxu0 %v474
    %615 = vmatprep.subr.mxu0 0.0
    %616 = vmatpush1.msra.mxu0 %v473
    %617 = vmatprep.subr.mxu0 0.0
    %618 = vmatpush1.msra.mxu0 %v472
    %619 = vmatprep.subr.mxu0 0.0
    %620 = vmatpush1.msra.mxu0 %v471
    %621 = vmatprep.subr.mxu0 0.0
    %622 = vmatpush1.msra.mxu0 %v470
    %623 = vmatprep.subr.mxu0 0.0
    %624 = vmatpush1.msra.mxu0 %v469
    %625 = vmatprep.subr.mxu0 0.0
    %626 = vmatpush1.msra.mxu0 %v468
    %627 = vmatprep.subr.mxu0 0.0
    %628 = vmatpush1.msra.mxu0 %v467
    %629 = vmatprep.subr.mxu0 0.0
    %630 = vmatpush2.msra.mxu0 %v498
    %631 = vmatprep.subr.mxu0 0.0
    %632 = vmatpush2.msra.mxu0 %v497
    %633 = vmatprep.subr.mxu0 0.0
    %634 = vmatpush2.msra.mxu0 %v496
    %635 = vmatprep.subr.mxu0 0.0
    %636 = vmatpush2.msra.mxu0 %v495
    %637 = vmatprep.subr.mxu0 0.0
    %638 = vmatpush2.msra.mxu0 %v494
    %639 = vmatprep.subr.mxu0 0.0
    %640 = vmatpush2.msra.mxu0 %v493
    %641 = vmatprep.subr.mxu0 0.0
    %642 = vmatpush2.msra.mxu0 %v492
    %643 = vmatprep.subr.mxu0 0.0
    %644 = vmatpush2.msra.mxu0 %v491
    %645 = vmatprep.subr.mxu0 0.0
    %646 = vmatpush2.msra.mxu0 %v490
    %647 = vmatprep.subr.mxu0 0.0
    %648 = vmatpush2.msra.mxu0 %v489
    %649 = vmatprep.subr.mxu0 0.0
    %650 = vmatpush2.msra.mxu0 %v488
    %651 = vmatprep.subr.mxu0 0.0
    %652 = vmatpush2.msra.mxu0 %v487
    %653 = vmatprep.subr.mxu0 0.0
    %654 = vmatpush2.msra.mxu0 %v486
    %655 = vmatprep.subr.mxu0 0.0
    %656 = vmatpush2.msra.mxu0 %v485
    %657 = vmatprep.subr.mxu0 0.0
    %658 = vmatpush2.msra.mxu0 %v484
    %659 = vmatprep.subr.mxu0 0.0
    %660 = vmatpush2.msra.mxu0 %v483
    %661 = vmatprep.mubr.f32.mxu0 %v418
    %662 = vmatmul.mubr.f32.gmra.mxu0 %v417
    %v663 = vpop.f32.mrf.mxu0
    %v664 = vadd.f32 %v589, %v663
    %v665 = vpop.f32.mrf.mxu0
    %666 = vmatprep.mubr.f32.mxu0 %v423
    %667 = vmatmul.mubr.f32.gmra.mxu0 %v422
    %v668 = vpop.f32.mrf.mxu0
    %v669 = vadd.f32 %v594, %v668
    %v670 = vpop.f32.mrf.mxu0
    %671 = vdwg.mxu0
    %672 = vmatprep.subr.mxu0 0.0
    %673 = vmatpush1.msra.mxu0 %v514
    %674 = vmatprep.subr.mxu0 0.0
    %675 = vmatpush1.msra.mxu0 %v513
    %676 = vmatprep.subr.mxu0 0.0
    %677 = vmatpush1.msra.mxu0 %v512
    %678 = vmatprep.subr.mxu0 0.0
    %679 = vmatpush1.msra.mxu0 %v511
    %680 = vmatprep.subr.mxu0 0.0
    %681 = vmatpush1.msra.mxu0 %v510
    %682 = vmatprep.subr.mxu0 0.0
    %683 = vmatpush1.msra.mxu0 %v509
    %684 = vmatprep.subr.mxu0 0.0
    %685 = vmatpush1.msra.mxu0 %v508
    %686 = vmatprep.subr.mxu0 0.0
    %687 = vmatpush1.msra.mxu0 %v507
    %688 = vmatprep.subr.mxu0 0.0
    %689 = vmatpush1.msra.mxu0 %v506
    %690 = vmatprep.subr.mxu0 0.0
    %691 = vmatpush1.msra.mxu0 %v505
    %692 = vmatprep.subr.mxu0 0.0
    %693 = vmatpush1.msra.mxu0 %v504
    %694 = vmatprep.subr.mxu0 0.0
    %695 = vmatpush1.msra.mxu0 %v503
    %696 = vmatprep.subr.mxu0 0.0
    %697 = vmatpush1.msra.mxu0 %v502
    %698 = vmatprep.subr.mxu0 0.0
    %699 = vmatpush1.msra.mxu0 %v501
    %700 = vmatprep.subr.mxu0 0.0
    %701 = vmatpush1.msra.mxu0 %v500
    %702 = vmatprep.subr.mxu0 0.0
    %703 = vmatpush1.msra.mxu0 %v499
    %704 = vmatprep.subr.mxu0 0.0
    %705 = vmatpush2.msra.mxu0 0.0
    %706 = vmatprep.subr.mxu0 0.0
    %707 = vmatpush2.msra.mxu0 0.0
    %708 = vmatprep.subr.mxu0 0.0
    %709 = vmatpush2.msra.mxu0 0.0
    %710 = vmatprep.subr.mxu0 0.0
    %711 = vmatpush2.msra.mxu0 0.0
    %712 = vmatprep.subr.mxu0 0.0
    %713 = vmatpush2.msra.mxu0 0.0
    %714 = vmatprep.subr.mxu0 0.0
    %715 = vmatpush2.msra.mxu0 0.0
    %716 = vmatprep.subr.mxu0 0.0
    %717 = vmatpush2.msra.mxu0 0.0
    %718 = vmatprep.subr.mxu0 0.0
    %719 = vmatpush2.msra.mxu0 0.0
    %720 = vmatprep.subr.mxu0 0.0
    %721 = vmatpush2.msra.mxu0 0.0
    %722 = vmatprep.subr.mxu0 0.0
    %723 = vmatpush2.msra.mxu0 0.0
    %724 = vmatprep.subr.mxu0 0.0
    %725 = vmatpush2.msra.mxu0 0.0
    %726 = vmatprep.subr.mxu0 0.0
    %727 = vmatpush2.msra.mxu0 0.0
    %728 = vmatprep.subr.mxu0 0.0
    %729 = vmatpush2.msra.mxu0 0.0
    %730 = vmatprep.subr.mxu0 0.0
    %731 = vmatpush2.msra.mxu0 0.0
    %732 = vmatprep.subr.mxu0 0.0
    %733 = vmatpush2.msra.mxu0 0.0
    %734 = vmatprep.subr.mxu0 0.0
    %735 = vmatpush2.msra.mxu0 0.0
    %736 = vmatprep.mubr.f32.mxu0 0.0
    %737 = vmatmul.mubr.f32.gmra.mxu0 %v419
    %v738 = vpop.f32.mrf.mxu0
    %v739 = vadd.f32 %v664, %v738
    %v740 = vpop.f32.mrf.mxu0
    %741 = vmatprep.mubr.f32.mxu0 0.0
    %742 = vmatmul.mubr.f32.gmra.mxu0 %v424
    %v743 = vpop.f32.mrf.mxu0
    %v744 = vadd.f32 %v669, %v743
    %v745 = vpop.f32.mrf.mxu0
    %746 = vdwg.mxu0
    %747 = vst [vmem:[#allocation11] sm:$0xff] %v739
    %748 = vst [vmem:[#allocation11 + $0x8] sm:$0xff] %v744
    // Predicated region
    $region38: #{tpu_custom_call.1} parent=1 // pred_check
      _
    $region39: #{tpu_custom_call.1} parent=1 // pred_check_branch
      %750 = sbr.rel (0) target = $region41
    $region40: #{tpu_custom_call.1} parent=1 // pred_region
      %s752 = ssub.s32 1280, 1280
      %753 = vsyncadd [#allocation4], %s752
      %s754 = sshll.u32 [#allocation10], 4
      %s755 = int_to_ptr.vmem [resolvable:$true] %s754
      %760 = dma.vmem_to_hbm [thread:$0]  %s755, 1280, %s5, [#allocation4], 640, 640, 40
    $region41: #{tpu_custom_call.1} parent=1 // pred_fallthru
      _
    // Predicated region
    $region42: #{tpu_custom_call.1} parent=1 // pred_check
      _
    $region43: #{tpu_custom_call.1} parent=1 // pred_check_branch
      %762 = sbr.rel (0) target = $region45
    $region44: #{tpu_custom_call.1} parent=1 // pred_region
      %s764 = ssub.s32 256, 256
      %765 = vsyncadd [#allocation12], %s764
      %s766 = sshll.u32 [#allocation11], 4
      %s767 = int_to_ptr.vmem [resolvable:$true] %s766
      %772 = dma.vmem_to_hbm [thread:$0]  %s767, 256, %s6, [#allocation12], 128, 128, 8
    $region45: #{tpu_custom_call.1} parent=1 // pred_fallthru
      _
    // Predicated region
    $region46: #{tpu_custom_call.1} parent=1 // pred_check
      _
    $region47: #{tpu_custom_call.1} parent=1 // pred_check_branch
      %774 = sbr.rel (0) target = $region49
    $region48: #{tpu_custom_call.1} parent=1 // pred_region
      %775 = dma.done [#allocation4], 1280
    $region49: #{tpu_custom_call.1} parent=1 // pred_fallthru
      _
    // Predicated region
    $region50: #{tpu_custom_call.1} parent=1 // pred_check
      _
    $region51: #{tpu_custom_call.1} parent=1 // pred_check_branch
      %777 = sbr.rel (0) target = $region53
    $region52: #{tpu_custom_call.1} parent=1 // pred_region
      %778 = dma.done [#allocation12], 256
    $region53: #{tpu_custom_call.1} parent=1 // pred_fallthru
      _
    %779 = vsyncpa [#allocation3], 1
    %780 = vsyncpa [#allocation6], 1
    %781 = vsyncpa [#allocation9], 1
    %782 = vsyncpa [#allocation4], 1
    %783 = vsyncpa [#allocation12], 1

</llo_original>
